<compile_context>
chip_gen: v6e
topology: v6e:2x2x1
jax: 0.10.0
libtpu: 0.0.40
codegen_flags: <defaults>
</compile_context>

<pallas_src>
import functools

import jax
import jax.numpy as jnp
from jax.experimental import pallas as pl
from jax.experimental.pallas import tpu as pltpu


def _mlp_kernel(x_ref, w1_ref, b1_ref, w3_ref, b3_ref,
                gamma_ref, beta_ref, w2_ref, b2_ref, o_ref, *, eps):
    # bf16 MXU operands, f32 accumulation.
    xb = x_ref[...].astype(jnp.bfloat16)                                  # (tm, H)

    h1 = jnp.dot(xb, w1_ref[...], preferred_element_type=jnp.float32) + b1_ref[...]
    h3 = jnp.dot(xb, w3_ref[...], preferred_element_type=jnp.float32) + b3_ref[...]

    # SiLU(h1) * h3  (f32, EUP handles the sigmoid)
    h = (h1 * jax.nn.sigmoid(h1)) * h3                                    # (tm, I)

    # LayerNormFp32 over the intermediate dim — one-pass sum-based stats
    # (single reduction pass on the XLU, no double materialization of h - mu).
    inv_i = 1.0 / h.shape[-1]
    s = jnp.sum(h, axis=-1, keepdims=True)
    s2 = jnp.sum(h * h, axis=-1, keepdims=True)
    mu = s * inv_i
    var = jnp.maximum(s2 * inv_i - mu * mu, 0.0)
    hn = (h - mu) * jax.lax.rsqrt(var + eps)
    hn = hn * gamma_ref[...] + beta_ref[...]

    # Output projection (bf16 operands, f32 accumulate).
    o_ref[...] = (jnp.dot(hn.astype(jnp.bfloat16), w2_ref[...],
                          preferred_element_type=jnp.float32) + b2_ref[...])


def _pick_tm(n, target=256):
    """Largest multiple of 8 <= min(target, n) that divides n."""
    tm = min(target, n)
    tm -= tm % 8
    tm = max(tm, 8)
    while n % tm:
        tm -= 8
    return tm


def ureader_abstractor_mlp(hidden_states, params, *, eps=1e-6, tm=None):
    """hidden_states: [B, S, H] float32.  params: dict of weights (in->out layout)."""
    B, S, H = hidden_states.shape
    I = params["w1"].shape[1]
    N = B * S
    assert N % 8 == 0, "batch*seq must be a multiple of 8 (f32 sublane tiling)"
    if tm is None:
        tm = _pick_tm(N)
    assert N % tm == 0

    x2d = hidden_states.reshape(N, H).astype(jnp.float32)

    # Weights as bf16 MXU operands; biases / LN params stay f32.
    w1 = params["w1"].astype(jnp.bfloat16)
    w3 = params["w3"].astype(jnp.bfloat16)
    w2 = params["w2"].astype(jnp.bfloat16)
    b1 = params["b1"].astype(jnp.float32)
    b3 = params["b3"].astype(jnp.float32)
    g = params["ln_g"].astype(jnp.float32)
    b = params["ln_b"].astype(jnp.float32)
    b2 = params["b2"].astype(jnp.float32)

    kernel = functools.partial(_mlp_kernel, eps=eps)
    full = lambda i: (0, 0)  # weights: single resident block

    # VMEM budget: resident bf16 weights (worst-case double buffered) +
    # double-buffered x/out tiles + f32 (tm, I) intermediates + headroom.
    weight_bytes = 2 * (3 * H * I * 2 + 4 * I * 4 + H * 4)
    io_bytes = 2 * 2 * tm * H * 4
    scratch_bytes = 6 * tm * I * 4
    vmem_limit = int(min(max(weight_bytes + io_bytes + scratch_bytes + (4 << 20),
                             32 << 20), 64 << 20))

    cost = pl.CostEstimate(
        flops=6 * N * H * I,
        transcendentals=N * I + N,
        bytes_accessed=2 * N * H * 4 + 3 * H * I * 2 + (4 * I + H) * 4,
    )

    def build(weight_pipeline_mode):
        def wspec(shape):
            if weight_pipeline_mode is None:
                return pl.BlockSpec(shape, full)
            return pl.BlockSpec(shape, full, pipeline_mode=weight_pipeline_mode)

        return pl.pallas_call(
            kernel,
            out_shape=jax.ShapeDtypeStruct((N, H), jnp.float32),
            grid_spec=pltpu.PrefetchScalarGridSpec(
                num_scalar_prefetch=0,
                grid=(N // tm,),
                in_specs=[
                    pl.BlockSpec((tm, H), lambda i: (i, 0)),   # x rows (streamed)
                    wspec((H, I)),                             # w1
                    wspec((1, I)),                             # b1
                    wspec((H, I)),                             # w3
                    wspec((1, I)),                             # b3
                    wspec((1, I)),                             # ln gamma
                    wspec((1, I)),                             # ln beta
                    wspec((I, H)),                             # w2
                    wspec((1, H)),                             # b2
                ],
                out_specs=pl.BlockSpec((tm, H), lambda i: (i, 0)),
            ),
            compiler_params=pltpu.CompilerParams(
                dimension_semantics=("parallel",),
                vmem_limit_bytes=vmem_limit),
            cost_estimate=cost,
        )

    args = (x2d, w1, b1, w3, b3, g, b, w2, b2)
    try:
        # Constant-index weights gain nothing from double buffering; request a
        # single resident buffer. Fall back if this JAX rejects Buffered(1).
        out2d = build(pl.Buffered(1))(*args)
    except Exception:
        out2d = build(None)(*args)

    return out2d.reshape(B, S, H)


def init_params(key, hidden_size, intermediate_size):
    ks = jax.random.split(key, 6)
    scale1 = 1.0 / jnp.sqrt(hidden_size)
    scale2 = 1.0 / jnp.sqrt(intermediate_size)
    # Stored as (in, out) so kernel does x @ W (equivalent to torch x @ W.T).
    return {
        "w1": jax.random.uniform(ks[0], (hidden_size, intermediate_size),
                                 jnp.float32, -scale1, scale1),
        "b1": jax.random.uniform(ks[1], (1, intermediate_size),
                                 jnp.float32, -scale1, scale1),
        "w3": jax.random.uniform(ks[2], (hidden_size, intermediate_size),
                                 jnp.float32, -scale1, scale1),
        "b3": jax.random.uniform(ks[3], (1, intermediate_size),
                                 jnp.float32, -scale1, scale1),
        "w2": jax.random.uniform(ks[4], (intermediate_size, hidden_size),
                                 jnp.float32, -scale2, scale2),
        "b2": jax.random.uniform(ks[5], (1, hidden_size),
                                 jnp.float32, -scale2, scale2),
        "ln_g": jnp.ones((1, intermediate_size), jnp.float32),
        "ln_b": jnp.zeros((1, intermediate_size), jnp.float32),
    }


def _reference_f32(x, params, eps=1e-6):
    h1 = x @ params["w1"] + params["b1"][0]
    h3 = x @ params["w3"] + params["b3"][0]
    h = jax.nn.silu(h1) * h3
    mu = jnp.mean(h, axis=-1, keepdims=True)
    var = jnp.mean((h - mu) ** 2, axis=-1, keepdims=True)
    hn = (h - mu) * jax.lax.rsqrt(var + eps) * params["ln_g"][0] + params["ln_b"][0]
    return hn @ params["w2"] + params["b2"][0]


def _reference_bf16(x, params, eps=1e-6):
    """Reference matching the kernel's numerics (bf16 MXU operands, f32 acc/LN)."""
    xb = x.astype(jnp.bfloat16)
    w1b = params["w1"].astype(jnp.bfloat16)
    w3b = params["w3"].astype(jnp.bfloat16)
    w2b = params["w2"].astype(jnp.bfloat16)
    h1 = jnp.dot(xb, w1b, preferred_element_type=jnp.float32) + params["b1"][0]
    h3 = jnp.dot(xb, w3b, preferred_element_type=jnp.float32) + params["b3"][0]
    h = (h1 * jax.nn.sigmoid(h1)) * h3
    mu = jnp.mean(h, axis=-1, keepdims=True)
    var = jnp.mean((h - mu) ** 2, axis=-1, keepdims=True)
    hn = (h - mu) * jax.lax.rsqrt(var + eps) * params["ln_g"][0] + params["ln_b"][0]
    return jnp.dot(hn.astype(jnp.bfloat16), w2b,
                   preferred_element_type=jnp.float32) + params["b2"][0]


if __name__ == "__main__":
    key = jax.random.PRNGKey(0)
    B, S, H, I = 2, 8, 32, 64          # batch, seq, hidden_size, intermediate_size
    k_x, k_p = jax.random.split(key)

    x = jax.random.normal(k_x, (B, S, H), jnp.float32)
    params = init_params(k_p, H, I)

    out = ureader_abstractor_mlp(x, params, eps=1e-6)
    out = jax.block_until_ready(out)
    assert out.shape == (B, S, H)

    x2d = x.reshape(B * S, H)
    out2d = out.reshape(B * S, H)

    # Tight check against a reference with matched (bf16-operand) numerics.
    ref_bf16 = _reference_bf16(x2d, params, eps=1e-6)
    assert jnp.allclose(out2d, ref_bf16, atol=2e-3, rtol=2e-3), \
        "mismatch vs bf16-matched reference"

    # Loose check against the pure-f32 reference (bf16 operand rounding only).
    ref_f32 = _reference_f32(x2d, params, eps=1e-6)
    assert jnp.allclose(out2d, ref_f32, atol=1e-1, rtol=1e-1), \
        "mismatch vs f32 reference"

    print("KERNEL_OK")
</pallas_src>

<mosaic_0001>
module attributes {stable_mosaic.version = 11 : i64} {
  func.func @_mlp_kernel(%arg0: i32, %arg1: memref<16x32xf32, #tpu.memory_space<vmem>>, %arg2: memref<32x64xbf16, #tpu.memory_space<vmem>>, %arg3: memref<1x64xf32, #tpu.memory_space<vmem>>, %arg4: memref<32x64xbf16, #tpu.memory_space<vmem>>, %arg5: memref<1x64xf32, #tpu.memory_space<vmem>>, %arg6: memref<1x64xf32, #tpu.memory_space<vmem>>, %arg7: memref<1x64xf32, #tpu.memory_space<vmem>>, %arg8: memref<64x32xbf16, #tpu.memory_space<vmem>>, %arg9: memref<1x32xf32, #tpu.memory_space<vmem>>, %arg10: memref<16x32xf32, #tpu.memory_space<vmem>>) attributes {dimension_semantics = [#tpu.dimension_semantics<parallel>], iteration_bounds = array<i64: 1>, scalar_prefetch = 0 : i64, scratch_operands = 0 : i64, tpu.core_type = #tpu.core_type<tc>, window_params = [{transform_indices = @transform_0, window_bounds = array<i64: 16, 32>}, {pipeline_mode = #tpu.pipeline_mode<synchronous>, transform_indices = @transform_1, window_bounds = array<i64: 32, 64>}, {pipeline_mode = #tpu.pipeline_mode<synchronous>, transform_indices = @transform_2, window_bounds = array<i64: 1, 64>}, {pipeline_mode = #tpu.pipeline_mode<synchronous>, transform_indices = @transform_3, window_bounds = array<i64: 32, 64>}, {pipeline_mode = #tpu.pipeline_mode<synchronous>, transform_indices = @transform_4, window_bounds = array<i64: 1, 64>}, {pipeline_mode = #tpu.pipeline_mode<synchronous>, transform_indices = @transform_5, window_bounds = array<i64: 1, 64>}, {pipeline_mode = #tpu.pipeline_mode<synchronous>, transform_indices = @transform_6, window_bounds = array<i64: 1, 64>}, {pipeline_mode = #tpu.pipeline_mode<synchronous>, transform_indices = @transform_7, window_bounds = array<i64: 64, 32>}, {pipeline_mode = #tpu.pipeline_mode<synchronous>, transform_indices = @transform_8, window_bounds = array<i64: 1, 32>}, {transform_indices = @transform_9, window_bounds = array<i64: 16, 32>}]} {
    %c0 = arith.constant 0 : index
    %c0_0 = arith.constant 0 : index
    %0 = vector.load %arg1[%c0, %c0_0] : memref<16x32xf32, #tpu.memory_space<vmem>>, vector<16x32xf32>
    %1 = arith.truncf %0 : vector<16x32xf32> to vector<16x32xbf16>
    %c0_1 = arith.constant 0 : index
    %c0_2 = arith.constant 0 : index
    %2 = vector.load %arg2[%c0_1, %c0_2] : memref<32x64xbf16, #tpu.memory_space<vmem>>, vector<32x64xbf16>
    %cst = arith.constant dense<0.000000e+00> : vector<16x64xf32>
    %3 = tpu.matmul %1, %2, %cst {dimension_numbers = #tpu.dot_dimension_numbers<[1], [0], [0], [1], [0, 0, 1, 1], [], []>} : vector<16x32xbf16>, vector<32x64xbf16>, vector<16x64xf32> -> vector<16x64xf32>
    %c0_3 = arith.constant 0 : index
    %c0_4 = arith.constant 0 : index
    %4 = vector.load %arg3[%c0_3, %c0_4] : memref<1x64xf32, #tpu.memory_space<vmem>>, vector<1x64xf32>
    %5 = vector.broadcast %4 : vector<1x64xf32> to vector<16x64xf32>
    %6 = arith.addf %3, %5 : vector<16x64xf32>
    %c0_5 = arith.constant 0 : index
    %c0_6 = arith.constant 0 : index
    %7 = vector.load %arg4[%c0_5, %c0_6] : memref<32x64xbf16, #tpu.memory_space<vmem>>, vector<32x64xbf16>
    %cst_7 = arith.constant dense<0.000000e+00> : vector<16x64xf32>
    %8 = tpu.matmul %1, %7, %cst_7 {dimension_numbers = #tpu.dot_dimension_numbers<[1], [0], [0], [1], [0, 0, 1, 1], [], []>} : vector<16x32xbf16>, vector<32x64xbf16>, vector<16x64xf32> -> vector<16x64xf32>
    %c0_8 = arith.constant 0 : index
    %c0_9 = arith.constant 0 : index
    %9 = vector.load %arg5[%c0_8, %c0_9] : memref<1x64xf32, #tpu.memory_space<vmem>>, vector<1x64xf32>
    %10 = vector.broadcast %9 : vector<1x64xf32> to vector<16x64xf32>
    %11 = arith.addf %8, %10 : vector<16x64xf32>
    %12 = arith.negf %6 : vector<16x64xf32>
    %13 = math.exp %12 : vector<16x64xf32>
    %cst_10 = arith.constant 1.000000e+00 : f32
    %14 = vector.broadcast %cst_10 : f32 to vector<16x64xf32>
    %15 = arith.addf %14, %13 : vector<16x64xf32>
    %16 = arith.divf %14, %15 : vector<16x64xf32>
    %17 = arith.mulf %6, %16 : vector<16x64xf32>
    %18 = arith.mulf %17, %11 : vector<16x64xf32>
    %cst_11 = arith.constant dense<0.000000e+00> : vector<16xf32>
    %19 = vector.multi_reduction <add>, %18, %cst_11 [1] : vector<16x64xf32> to vector<16xf32>
    %20 = vector.shape_cast %19 : vector<16xf32> to vector<16x1xf32>
    %21 = arith.mulf %18, %18 : vector<16x64xf32>
    %cst_12 = arith.constant dense<0.000000e+00> : vector<16xf32>
    %22 = vector.multi_reduction <add>, %21, %cst_12 [1] : vector<16x64xf32> to vector<16xf32>
    %23 = vector.shape_cast %22 : vector<16xf32> to vector<16x1xf32>
    %cst_13 = arith.constant 1.562500e-02 : f32
    %24 = vector.broadcast %cst_13 : f32 to vector<16x1xf32>
    %25 = arith.mulf %20, %24 : vector<16x1xf32>
    %cst_14 = arith.constant 1.562500e-02 : f32
    %26 = vector.broadcast %cst_14 : f32 to vector<16x1xf32>
    %27 = arith.mulf %23, %26 : vector<16x1xf32>
    %28 = arith.mulf %25, %25 : vector<16x1xf32>
    %29 = arith.subf %27, %28 : vector<16x1xf32>
    %cst_15 = arith.constant 0.000000e+00 : f32
    %30 = vector.broadcast %cst_15 : f32 to vector<16x1xf32>
    %31 = arith.maximumf %29, %30 : vector<16x1xf32>
    %32 = vector.broadcast %25 : vector<16x1xf32> to vector<16x64xf32>
    %33 = arith.subf %18, %32 : vector<16x64xf32>
    %cst_16 = arith.constant 9.99999997E-7 : f32
    %34 = vector.broadcast %cst_16 : f32 to vector<16x1xf32>
    %35 = arith.addf %31, %34 : vector<16x1xf32>
    %36 = math.rsqrt %35 : vector<16x1xf32>
    %37 = vector.broadcast %36 : vector<16x1xf32> to vector<16x64xf32>
    %38 = arith.mulf %33, %37 : vector<16x64xf32>
    %c0_17 = arith.constant 0 : index
    %c0_18 = arith.constant 0 : index
    %39 = vector.load %arg6[%c0_17, %c0_18] : memref<1x64xf32, #tpu.memory_space<vmem>>, vector<1x64xf32>
    %40 = vector.broadcast %39 : vector<1x64xf32> to vector<16x64xf32>
    %41 = arith.mulf %38, %40 : vector<16x64xf32>
    %c0_19 = arith.constant 0 : index
    %c0_20 = arith.constant 0 : index
    %42 = vector.load %arg7[%c0_19, %c0_20] : memref<1x64xf32, #tpu.memory_space<vmem>>, vector<1x64xf32>
    %43 = vector.broadcast %42 : vector<1x64xf32> to vector<16x64xf32>
    %44 = arith.addf %41, %43 : vector<16x64xf32>
    %45 = arith.truncf %44 : vector<16x64xf32> to vector<16x64xbf16>
    %c0_21 = arith.constant 0 : index
    %c0_22 = arith.constant 0 : index
    %46 = vector.load %arg8[%c0_21, %c0_22] : memref<64x32xbf16, #tpu.memory_space<vmem>>, vector<64x32xbf16>
    %cst_23 = arith.constant dense<0.000000e+00> : vector<16x32xf32>
    %47 = tpu.matmul %45, %46, %cst_23 {dimension_numbers = #tpu.dot_dimension_numbers<[1], [0], [0], [1], [0, 0, 1, 1], [], []>} : vector<16x64xbf16>, vector<64x32xbf16>, vector<16x32xf32> -> vector<16x32xf32>
    %c0_24 = arith.constant 0 : index
    %c0_25 = arith.constant 0 : index
    %48 = vector.load %arg9[%c0_24, %c0_25] : memref<1x32xf32, #tpu.memory_space<vmem>>, vector<1x32xf32>
    %49 = vector.broadcast %48 : vector<1x32xf32> to vector<16x32xf32>
    %50 = arith.addf %47, %49 : vector<16x32xf32>
    %c0_26 = arith.constant 0 : index
    %c0_27 = arith.constant 0 : index
    %51 = vector.load %arg10[%c0_26, %c0_27] : memref<16x32xf32, #tpu.memory_space<vmem>>, vector<16x32xf32>
    tpu.vector_store %arg10[%c0_26, %c0_27], %50 {strides = array<i32>} : memref<16x32xf32, #tpu.memory_space<vmem>>, vector<16x32xf32>,
    return
  }
  func.func @transform_0(%arg0: i32) -> (i32, i32) {
    %c0_i32 = arith.constant 0 : i32
    %c0_i32_0 = arith.constant 0 : i32
    return %arg0, %c0_i32 : i32, i32
  }
  func.func @transform_1(%arg0: i32) -> (i32, i32) {
    %c0_i32 = arith.constant 0 : i32
    %c0_i32_0 = arith.constant 0 : i32
    %c0_i32_1 = arith.constant 0 : i32
    return %c0_i32, %c0_i32_0 : i32, i32
  }
  func.func @transform_2(%arg0: i32) -> (i32, i32) {
    %c0_i32 = arith.constant 0 : i32
    %c0_i32_0 = arith.constant 0 : i32
    %c0_i32_1 = arith.constant 0 : i32
    return %c0_i32, %c0_i32_0 : i32, i32
  }
  func.func @transform_3(%arg0: i32) -> (i32, i32) {
    %c0_i32 = arith.constant 0 : i32
    %c0_i32_0 = arith.constant 0 : i32
    %c0_i32_1 = arith.constant 0 : i32
    return %c0_i32, %c0_i32_0 : i32, i32
  }
  func.func @transform_4(%arg0: i32) -> (i32, i32) {
    %c0_i32 = arith.constant 0 : i32
    %c0_i32_0 = arith.constant 0 : i32
    %c0_i32_1 = arith.constant 0 : i32
    return %c0_i32, %c0_i32_0 : i32, i32
  }
  func.func @transform_5(%arg0: i32) -> (i32, i32) {
    %c0_i32 = arith.constant 0 : i32
    %c0_i32_0 = arith.constant 0 : i32
    %c0_i32_1 = arith.constant 0 : i32
    return %c0_i32, %c0_i32_0 : i32, i32
  }
  func.func @transform_6(%arg0: i32) -> (i32, i32) {
    %c0_i32 = arith.constant 0 : i32
    %c0_i32_0 = arith.constant 0 : i32
    %c0_i32_1 = arith.constant 0 : i32
    return %c0_i32, %c0_i32_0 : i32, i32
  }
  func.func @transform_7(%arg0: i32) -> (i32, i32) {
    %c0_i32 = arith.constant 0 : i32
    %c0_i32_0 = arith.constant 0 : i32
    %c0_i32_1 = arith.constant 0 : i32
    return %c0_i32, %c0_i32_0 : i32, i32
  }
  func.func @transform_8(%arg0: i32) -> (i32, i32) {
    %c0_i32 = arith.constant 0 : i32
    %c0_i32_0 = arith.constant 0 : i32
    %c0_i32_1 = arith.constant 0 : i32
    return %c0_i32, %c0_i32_0 : i32, i32
  }
  func.func @transform_9(%arg0: i32) -> (i32, i32) {
    %c0_i32 = arith.constant 0 : i32
    %c0_i32_0 = arith.constant 0 : i32
    return %arg0, %c0_i32 : i32, i32
  }
}

module attributes {stable_mosaic.version = 11 : i64} {
  func.func @_mlp_kernel(%arg0: i32, %arg1: memref<16x32xf32, #tpu.memory_space<vmem>>, %arg2: memref<32x64xbf16, #tpu.memory_space<vmem>>, %arg3: memref<1x64xf32, #tpu.memory_space<vmem>>, %arg4: memref<32x64xbf16, #tpu.memory_space<vmem>>, %arg5: memref<1x64xf32, #tpu.memory_space<vmem>>, %arg6: memref<1x64xf32, #tpu.memory_space<vmem>>, %arg7: memref<1x64xf32, #tpu.memory_space<vmem>>, %arg8: memref<64x32xbf16, #tpu.memory_space<vmem>>, %arg9: memref<1x32xf32, #tpu.memory_space<vmem>>, %arg10: memref<16x32xf32, #tpu.memory_space<vmem>>) attributes {dimension_semantics = [#tpu.dimension_semantics<parallel>], iteration_bounds = array<i64: 1>, scalar_prefetch = 0 : i64, scratch_operands = 0 : i64, tpu.core_type = #tpu.core_type<tc>, window_params = [{transform_indices = @transform_0, window_bounds = array<i64: 16, 32>}, {pipeline_mode = #tpu.pipeline_mode<synchronous>, transform_indices = @transform_1, window_bounds = array<i64: 32, 64>}, {pipeline_mode = #tpu.pipeline_mode<synchronous>, transform_indices = @transform_2, window_bounds = array<i64: 1, 64>}, {pipeline_mode = #tpu.pipeline_mode<synchronous>, transform_indices = @transform_3, window_bounds = array<i64: 32, 64>}, {pipeline_mode = #tpu.pipeline_mode<synchronous>, transform_indices = @transform_4, window_bounds = array<i64: 1, 64>}, {pipeline_mode = #tpu.pipeline_mode<synchronous>, transform_indices = @transform_5, window_bounds = array<i64: 1, 64>}, {pipeline_mode = #tpu.pipeline_mode<synchronous>, transform_indices = @transform_6, window_bounds = array<i64: 1, 64>}, {pipeline_mode = #tpu.pipeline_mode<synchronous>, transform_indices = @transform_7, window_bounds = array<i64: 64, 32>}, {pipeline_mode = #tpu.pipeline_mode<synchronous>, transform_indices = @transform_8, window_bounds = array<i64: 1, 32>}, {transform_indices = @transform_9, window_bounds = array<i64: 16, 32>}]} {
    %c0 = arith.constant 0 : index
    %c0_0 = arith.constant 0 : index
    %0 = vector.load %arg1[%c0, %c0_0] : memref<16x32xf32, #tpu.memory_space<vmem>>, vector<16x32xf32>
    %1 = arith.truncf %0 : vector<16x32xf32> to vector<16x32xbf16>
    %c0_1 = arith.constant 0 : index
    %c0_2 = arith.constant 0 : index
    %2 = vector.load %arg2[%c0_1, %c0_2] : memref<32x64xbf16, #tpu.memory_space<vmem>>, vector<32x64xbf16>
    %cst = arith.constant dense<0.000000e+00> : vector<16x64xf32>
    %3 = tpu.matmul %1, %2, %cst {dimension_numbers = #tpu.dot_dimension_numbers<[1], [0], [0], [1], [0, 0, 1, 1], [], []>} : vector<16x32xbf16>, vector<32x64xbf16>, vector<16x64xf32> -> vector<16x64xf32>
    %c0_3 = arith.constant 0 : index
    %c0_4 = arith.constant 0 : index
    %4 = vector.load %arg3[%c0_3, %c0_4] : memref<1x64xf32, #tpu.memory_space<vmem>>, vector<1x64xf32>
    %5 = vector.broadcast %4 : vector<1x64xf32> to vector<16x64xf32>
    %6 = arith.addf %3, %5 : vector<16x64xf32>
    %c0_5 = arith.constant 0 : index
    %c0_6 = arith.constant 0 : index
    %7 = vector.load %arg4[%c0_5, %c0_6] : memref<32x64xbf16, #tpu.memory_space<vmem>>, vector<32x64xbf16>
    %cst_7 = arith.constant dense<0.000000e+00> : vector<16x64xf32>
    %8 = tpu.matmul %1, %7, %cst_7 {dimension_numbers = #tpu.dot_dimension_numbers<[1], [0], [0], [1], [0, 0, 1, 1], [], []>} : vector<16x32xbf16>, vector<32x64xbf16>, vector<16x64xf32> -> vector<16x64xf32>
    %c0_8 = arith.constant 0 : index
    %c0_9 = arith.constant 0 : index
    %9 = vector.load %arg5[%c0_8, %c0_9] : memref<1x64xf32, #tpu.memory_space<vmem>>, vector<1x64xf32>
    %10 = vector.broadcast %9 : vector<1x64xf32> to vector<16x64xf32>
    %11 = arith.addf %8, %10 : vector<16x64xf32>
    %12 = arith.negf %6 : vector<16x64xf32>
    %13 = math.exp %12 : vector<16x64xf32>
    %cst_10 = arith.constant 1.000000e+00 : f32
    %14 = vector.broadcast %cst_10 : f32 to vector<16x64xf32>
    %15 = arith.addf %14, %13 : vector<16x64xf32>
    %16 = arith.divf %14, %15 : vector<16x64xf32>
    %17 = arith.mulf %6, %16 : vector<16x64xf32>
    %18 = arith.mulf %17, %11 : vector<16x64xf32>
    %cst_11 = arith.constant dense<0.000000e+00> : vector<16xf32>
    %19 = vector.multi_reduction <add>, %18, %cst_11 [1] : vector<16x64xf32> to vector<16xf32>
    %20 = vector.shape_cast %19 : vector<16xf32> to vector<16x1xf32>
    %21 = arith.mulf %18, %18 : vector<16x64xf32>
    %cst_12 = arith.constant dense<0.000000e+00> : vector<16xf32>
    %22 = vector.multi_reduction <add>, %21, %cst_12 [1] : vector<16x64xf32> to vector<16xf32>
    %23 = vector.shape_cast %22 : vector<16xf32> to vector<16x1xf32>
    %cst_13 = arith.constant 1.562500e-02 : f32
    %24 = vector.broadcast %cst_13 : f32 to vector<16x1xf32>
    %25 = arith.mulf %20, %24 : vector<16x1xf32>
    %cst_14 = arith.constant 1.562500e-02 : f32
    %26 = vector.broadcast %cst_14 : f32 to vector<16x1xf32>
    %27 = arith.mulf %23, %26 : vector<16x1xf32>
    %28 = arith.mulf %25, %25 : vector<16x1xf32>
    %29 = arith.subf %27, %28 : vector<16x1xf32>
    %cst_15 = arith.constant 0.000000e+00 : f32
    %30 = vector.broadcast %cst_15 : f32 to vector<16x1xf32>
    %31 = arith.maximumf %29, %30 : vector<16x1xf32>
    %32 = vector.broadcast %25 : vector<16x1xf32> to vector<16x64xf32>
    %33 = arith.subf %18, %32 : vector<16x64xf32>
    %cst_16 = arith.constant 9.99999997E-7 : f32
    %34 = vector.broadcast %cst_16 : f32 to vector<16x1xf32>
    %35 = arith.addf %31, %34 : vector<16x1xf32>
    %36 = math.rsqrt %35 : vector<16x1xf32>
    %37 = vector.broadcast %36 : vector<16x1xf32> to vector<16x64xf32>
    %38 = arith.mulf %33, %37 : vector<16x64xf32>
    %c0_17 = arith.constant 0 : index
    %c0_18 = arith.constant 0 : index
    %39 = vector.load %arg6[%c0_17, %c0_18] : memref<1x64xf32, #tpu.memory_space<vmem>>, vector<1x64xf32>
    %40 = vector.broadcast %39 : vector<1x64xf32> to vector<16x64xf32>
    %41 = arith.mulf %38, %40 : vector<16x64xf32>
    %c0_19 = arith.constant 0 : index
    %c0_20 = arith.constant 0 : index
    %42 = vector.load %arg7[%c0_19, %c0_20] : memref<1x64xf32, #tpu.memory_space<vmem>>, vector<1x64xf32>
    %43 = vector.broadcast %42 : vector<1x64xf32> to vector<16x64xf32>
    %44 = arith.addf %41, %43 : vector<16x64xf32>
    %45 = arith.truncf %44 : vector<16x64xf32> to vector<16x64xbf16>
    %c0_21 = arith.constant 0 : index
    %c0_22 = arith.constant 0 : index
    %46 = vector.load %arg8[%c0_21, %c0_22] : memref<64x32xbf16, #tpu.memory_space<vmem>>, vector<64x32xbf16>
    %cst_23 = arith.constant dense<0.000000e+00> : vector<16x32xf32>
    %47 = tpu.matmul %45, %46, %cst_23 {dimension_numbers = #tpu.dot_dimension_numbers<[1], [0], [0], [1], [0, 0, 1, 1], [], []>} : vector<16x64xbf16>, vector<64x32xbf16>, vector<16x32xf32> -> vector<16x32xf32>
    %c0_24 = arith.constant 0 : index
    %c0_25 = arith.constant 0 : index
    %48 = vector.load %arg9[%c0_24, %c0_25] : memref<1x32xf32, #tpu.memory_space<vmem>>, vector<1x32xf32>
    %49 = vector.broadcast %48 : vector<1x32xf32> to vector<16x32xf32>
    %50 = arith.addf %47, %49 : vector<16x32xf32>
    %c0_26 = arith.constant 0 : index
    %c0_27 = arith.constant 0 : index
    %51 = vector.load %arg10[%c0_26, %c0_27] : memref<16x32xf32, #tpu.memory_space<vmem>>, vector<16x32xf32>
    tpu.vector_store %arg10[%c0_26, %c0_27], %50 {strides = array<i32>} : memref<16x32xf32, #tpu.memory_space<vmem>>, vector<16x32xf32>,
    return
  }
  func.func @transform_0(%arg0: i32) -> (i32, i32) {
    %c0_i32 = arith.constant 0 : i32
    %c0_i32_0 = arith.constant 0 : i32
    return %arg0, %c0_i32 : i32, i32
  }
  func.func @transform_1(%arg0: i32) -> (i32, i32) {
    %c0_i32 = arith.constant 0 : i32
    %c0_i32_0 = arith.constant 0 : i32
    %c0_i32_1 = arith.constant 0 : i32
    return %c0_i32, %c0_i32_0 : i32, i32
  }
  func.func @transform_2(%arg0: i32) -> (i32, i32) {
    %c0_i32 = arith.constant 0 : i32
    %c0_i32_0 = arith.constant 0 : i32
    %c0_i32_1 = arith.constant 0 : i32
    return %c0_i32, %c0_i32_0 : i32, i32
  }
  func.func @transform_3(%arg0: i32) -> (i32, i32) {
    %c0_i32 = arith.constant 0 : i32
    %c0_i32_0 = arith.constant 0 : i32
    %c0_i32_1 = arith.constant 0 : i32
    return %c0_i32, %c0_i32_0 : i32, i32
  }
  func.func @transform_4(%arg0: i32) -> (i32, i32) {
    %c0_i32 = arith.constant 0 : i32
    %c0_i32_0 = arith.constant 0 : i32
    %c0_i32_1 = arith.constant 0 : i32
    return %c0_i32, %c0_i32_0 : i32, i32
  }
  func.func @transform_5(%arg0: i32) -> (i32, i32) {
    %c0_i32 = arith.constant 0 : i32
    %c0_i32_0 = arith.constant 0 : i32
    %c0_i32_1 = arith.constant 0 : i32
    return %c0_i32, %c0_i32_0 : i32, i32
  }
  func.func @transform_6(%arg0: i32) -> (i32, i32) {
    %c0_i32 = arith.constant 0 : i32
    %c0_i32_0 = arith.constant 0 : i32
    %c0_i32_1 = arith.constant 0 : i32
    return %c0_i32, %c0_i32_0 : i32, i32
  }
  func.func @transform_7(%arg0: i32) -> (i32, i32) {
    %c0_i32 = arith.constant 0 : i32
    %c0_i32_0 = arith.constant 0 : i32
    %c0_i32_1 = arith.constant 0 : i32
    return %c0_i32, %c0_i32_0 : i32, i32
  }
  func.func @transform_8(%arg0: i32) -> (i32, i32) {
    %c0_i32 = arith.constant 0 : i32
    %c0_i32_0 = arith.constant 0 : i32
    %c0_i32_1 = arith.constant 0 : i32
    return %c0_i32, %c0_i32_0 : i32, i32
  }
  func.func @transform_9(%arg0: i32) -> (i32, i32) {
    %c0_i32 = arith.constant 0 : i32
    %c0_i32_0 = arith.constant 0 : i32
    return %arg0, %c0_i32 : i32, i32
  }
}

</mosaic_0001>

<llo_original>
// kernel: tpu_custom_call.1
$region0: #{tpu_custom_call.1}
  #allocation0 [shape = 'u32[]', space=smem, size = 0x4, offset = 0x4, fixed_abs, tag = 'smem constant byte address 0x4 - core index']
  #allocation1 [shape = 'u32[144,128]{1,0:T(1,128)}', space=vmem, size = 0x12000, scoped, tag = 'internal scratch']
  %s0 = inlined_call_operand.vmem [shape: f32[16,32], index: 0, kind: input, shape index: {}]
  %s1 = inlined_call_operand.vmem [shape: bf16[32,64], index: 1, kind: input, shape index: {}]
  %s2 = inlined_call_operand.vmem [shape: f32[1,64], index: 2, kind: input, shape index: {}]
  %s3 = inlined_call_operand.vmem [shape: bf16[32,64], index: 3, kind: input, shape index: {}]
  %s4 = inlined_call_operand.vmem [shape: f32[1,64], index: 4, kind: input, shape index: {}]
  %s5 = inlined_call_operand.vmem [shape: f32[1,64], index: 5, kind: input, shape index: {}]
  %s6 = inlined_call_operand.vmem [shape: f32[1,64], index: 6, kind: input, shape index: {}]
  %s7 = inlined_call_operand.vmem [shape: bf16[64,32], index: 7, kind: input, shape index: {}]
  %s8 = inlined_call_operand.vmem [shape: f32[1,32], index: 8, kind: input, shape index: {}]
  %s9 = inlined_call_operand.hbm [shape: f32[16,32], index: 9, kind: output, shape index: {}]
  %s10 = sld [smem:[#allocation0]]
  $region46: #{tpu_custom_call.1} parent=0
    _
  %s12 = ssub.s32 1, %s10
  %s13 = scalar_select 0, %s12, %s10
  $region1: #{tpu_custom_call.1} parent=0
    #allocation2 [shape = 'u8[8192]{0}', space=vmem, size = 0x2000, scoped, tag = 'output window, operand 0, single buffered']
    #allocation3 [shape = 's32[1]{0}', space=sflag, size = 0x4, scoped, tag = 'scoped memory for tpu_custom_call.1']
    %14 = vsyncpa [#allocation3], 0
    // Predicated region
    $region2: #{tpu_custom_call.1} parent=1 // pred_check
      _
    $region3: #{tpu_custom_call.1} parent=1 // pred_check_branch
      %16 = sbr.rel (0) target = $region5
    $region4: #{tpu_custom_call.1} parent=1 // pred_region
      _
    $region5: #{tpu_custom_call.1} parent=1 // pred_fallthru
      _
    // Predicated region
    $region6: #{tpu_custom_call.1} parent=1 // pred_check
      _
    $region7: #{tpu_custom_call.1} parent=1 // pred_check_branch
      %18 = sbr.rel (0) target = $region9
    $region8: #{tpu_custom_call.1} parent=1 // pred_region
      _
    $region9: #{tpu_custom_call.1} parent=1 // pred_fallthru
      _
    // Predicated region
    $region10: #{tpu_custom_call.1} parent=1 // pred_check
      _
    $region11: #{tpu_custom_call.1} parent=1 // pred_check_branch
      %20 = sbr.rel (0) target = $region13
    $region12: #{tpu_custom_call.1} parent=1 // pred_region
      _
    $region13: #{tpu_custom_call.1} parent=1 // pred_fallthru
      _
    // Predicated region
    $region14: #{tpu_custom_call.1} parent=1 // pred_check
      _
    $region15: #{tpu_custom_call.1} parent=1 // pred_check_branch
      %22 = sbr.rel (0) target = $region17
    $region16: #{tpu_custom_call.1} parent=1 // pred_region
      _
    $region17: #{tpu_custom_call.1} parent=1 // pred_fallthru
      _
    // Predicated region
    $region18: #{tpu_custom_call.1} parent=1 // pred_check
      _
    $region19: #{tpu_custom_call.1} parent=1 // pred_check_branch
      %24 = sbr.rel (0) target = $region21
    $region20: #{tpu_custom_call.1} parent=1 // pred_region
      _
    $region21: #{tpu_custom_call.1} parent=1 // pred_fallthru
      _
    // Predicated region
    $region22: #{tpu_custom_call.1} parent=1 // pred_check
      _
    $region23: #{tpu_custom_call.1} parent=1 // pred_check_branch
      %26 = sbr.rel (0) target = $region25
    $region24: #{tpu_custom_call.1} parent=1 // pred_region
      _
    $region25: #{tpu_custom_call.1} parent=1 // pred_fallthru
      _
    // Predicated region
    $region26: #{tpu_custom_call.1} parent=1 // pred_check
      _
    $region27: #{tpu_custom_call.1} parent=1 // pred_check_branch
      %28 = sbr.rel (0) target = $region29
    $region28: #{tpu_custom_call.1} parent=1 // pred_region
      _
    $region29: #{tpu_custom_call.1} parent=1 // pred_fallthru
      _
    // Predicated region
    $region30: #{tpu_custom_call.1} parent=1 // pred_check
      _
    $region31: #{tpu_custom_call.1} parent=1 // pred_check_branch
      %30 = sbr.rel (0) target = $region33
    $region32: #{tpu_custom_call.1} parent=1 // pred_region
      _
    $region33: #{tpu_custom_call.1} parent=1 // pred_fallthru
      _
    // Predicated region
    $region34: #{tpu_custom_call.1} parent=1 // pred_check
      _
    $region35: #{tpu_custom_call.1} parent=1 // pred_check_branch
      %32 = sbr.rel (0) target = $region37
    $region36: #{tpu_custom_call.1} parent=1 // pred_region
      _
    $region37: #{tpu_custom_call.1} parent=1 // pred_fallthru
      _
    %v34 = vld [vmem:[%s0] sm:$0xff]
    %v35 = vld [vmem:[%s0 + $0x8] sm:$0xff]
    %v36 = vpack.c.bf16 %v35, %v34
    %v37 = vld [vmem:[%s1] sm:$0xf]
    %v38 = vld [vmem:[%s1 + $0x4] sm:$0xf]
    %v39 = vld [vmem:[%s1 + $0x8] sm:$0xf]
    %v40 = vld [vmem:[%s1 + $0xc] sm:$0xf]
    %v41 = vld [vmem:[%s2] sm:$0x1]
    %v43 = vlaneseq
    %v44 = vshrl.u32 %v43, 7
    %v45 = vsub.s32 0, %v44
    %v46 = vrot.slane %v41, %v45
    %v52 = vunpack.c.l.b16 %v37
    %v53 = vunpack.c.l.b16 %v38
    %v54 = vunpack.c.l.b16 %v39
    %v55 = vunpack.c.l.b16 %v40
    %v56 = vpack.c.b16 %v53, %v52
    %v57 = vpack.c.b16 %v55, %v54
    %vm60 = vcmask 261120
    %v62 = vsel %vm60, %v36, 0
    %64 = vmatprep.subr.bf16.mxu0 0
    %65 = vmatpush1.bf16.msra.mxu0 0
    %66 = vmatprep.subr.bf16.mxu0 0
    %67 = vmatpush1.bf16.msra.mxu0 0
    %68 = vmatprep.subr.bf16.mxu0 0
    %69 = vmatpush1.bf16.msra.mxu0 0
    %70 = vmatprep.subr.bf16.mxu0 0
    %71 = vmatpush1.bf16.msra.mxu0 0
    %72 = vmatprep.subr.bf16.mxu0 0
    %73 = vmatpush1.bf16.msra.mxu0 0
    %74 = vmatprep.subr.bf16.mxu0 0
    %75 = vmatpush1.bf16.msra.mxu0 0
    %76 = vmatprep.subr.bf16.mxu0 0
    %77 = vmatpush1.bf16.msra.mxu0 %v57
    %78 = vmatprep.subr.bf16.mxu0 0
    %79 = vmatpush1.bf16.msra.mxu0 %v56
    %80 = vmatprep.subr.bf16.mxu0 0
    %81 = vmatpush2.bf16.msra.mxu0 0
    %82 = vmatprep.subr.bf16.mxu0 0
    %83 = vmatpush2.bf16.msra.mxu0 0
    %84 = vmatprep.subr.bf16.mxu0 0
    %85 = vmatpush2.bf16.msra.mxu0 0
    %86 = vmatprep.subr.bf16.mxu0 0
    %87 = vmatpush2.bf16.msra.mxu0 0
    %88 = vmatprep.subr.bf16.mxu0 0
    %89 = vmatpush2.bf16.msra.mxu0 0
    %90 = vmatprep.subr.bf16.mxu0 0
    %91 = vmatpush2.bf16.msra.mxu0 0
    %92 = vmatprep.subr.bf16.mxu0 0
    %93 = vmatpush2.bf16.msra.mxu0 0
    %94 = vmatprep.subr.bf16.mxu0 0
    %95 = vmatpush2.bf16.msra.mxu0 0
    %96 = vmatprep.mubr.bf16.mxu0 0
    %97 = vmatmul.mubr.bf16.gmra.mxu0 %v62
    %v98 = vpop.f32.mrf.mxu0
    %v99 = vadd.f32 %v46, %v98
    %v100 = vpop.f32.mrf.mxu0
    %v101 = vpop.f32.mrf.mxu0
    %v102 = vadd.f32 %v46, %v101
    %v103 = vpop.f32.mrf.mxu0
    %104 = vdwg.mxu0
    %v105 = vld [vmem:[%s3] sm:$0xf]
    %v106 = vld [vmem:[%s3 + $0x4] sm:$0xf]
    %v107 = vld [vmem:[%s3 + $0x8] sm:$0xf]
    %v108 = vld [vmem:[%s3 + $0xc] sm:$0xf]
    %v109 = vld [vmem:[%s4] sm:$0x1]
    %v111 = vlaneseq
    %v112 = vshrl.u32 %v111, 7
    %v113 = vsub.s32 0, %v112
    %v114 = vrot.slane %v109, %v113
    %v120 = vunpack.c.l.b16 %v105
    %v121 = vunpack.c.l.b16 %v106
    %v122 = vunpack.c.l.b16 %v107
    %v123 = vunpack.c.l.b16 %v108
    %v124 = vpack.c.b16 %v121, %v120
    %v125 = vpack.c.b16 %v123, %v122
    %128 = vmatprep.subr.bf16.mxu0 0
    %129 = vmatpush1.bf16.msra.mxu0 0
    %130 = vmatprep.subr.bf16.mxu0 0
    %131 = vmatpush1.bf16.msra.mxu0 0
    %132 = vmatprep.subr.bf16.mxu0 0
    %133 = vmatpush1.bf16.msra.mxu0 0
    %134 = vmatprep.subr.bf16.mxu0 0
    %135 = vmatpush1.bf16.msra.mxu0 0
    %136 = vmatprep.subr.bf16.mxu0 0
    %137 = vmatpush1.bf16.msra.mxu0 0
    %138 = vmatprep.subr.bf16.mxu0 0
    %139 = vmatpush1.bf16.msra.mxu0 0
    %140 = vmatprep.subr.bf16.mxu0 0
    %141 = vmatpush1.bf16.msra.mxu0 %v125
    %142 = vmatprep.subr.bf16.mxu0 0
    %143 = vmatpush1.bf16.msra.mxu0 %v124
    %144 = vmatprep.subr.bf16.mxu0 0
    %145 = vmatpush2.bf16.msra.mxu0 0
    %146 = vmatprep.subr.bf16.mxu0 0
    %147 = vmatpush2.bf16.msra.mxu0 0
    %148 = vmatprep.subr.bf16.mxu0 0
    %149 = vmatpush2.bf16.msra.mxu0 0
    %150 = vmatprep.subr.bf16.mxu0 0
    %151 = vmatpush2.bf16.msra.mxu0 0
    %152 = vmatprep.subr.bf16.mxu0 0
    %153 = vmatpush2.bf16.msra.mxu0 0
    %154 = vmatprep.subr.bf16.mxu0 0
    %155 = vmatpush2.bf16.msra.mxu0 0
    %156 = vmatprep.subr.bf16.mxu0 0
    %157 = vmatpush2.bf16.msra.mxu0 0
    %158 = vmatprep.subr.bf16.mxu0 0
    %159 = vmatpush2.bf16.msra.mxu0 0
    %160 = vmatprep.mubr.bf16.mxu0 0
    %161 = vmatmul.mubr.bf16.gmra.mxu0 %v62
    %v162 = vpop.f32.mrf.mxu0
    %v163 = vadd.f32 %v114, %v162
    %v164 = vpop.f32.mrf.mxu0
    %v165 = vpop.f32.mrf.mxu0
    %v166 = vadd.f32 %v114, %v165
    %v167 = vpop.f32.mrf.mxu0
    %168 = vdwg.mxu0
    %v169 = vxor.u32 %v99, 2147483648
    %v170 = vxor.u32 %v102, 2147483648
    %v171 = vmul.f32 %v169, 1.442695
    %v172 = vpow.pop %v171
    %v173 = vmul.f32 %v170, 1.442695
    %v174 = vpow.pop %v173
    %v175 = vadd.f32 %v172, 1.0
    %v176 = vadd.f32 %v174, 1.0
    %v177 = vrcp.pop %v175
    %v178 = vmul.f32 1.0, %v177
    %v179 = vrcp.pop %v176
    %v180 = vmul.f32 1.0, %v179
    %v181 = vmul.f32 %v99, %v178
    %v182 = vmul.f32 %v102, %v180
    %v183 = vmul.f32 %v181, %v163
    %v184 = vmul.f32 %v182, %v166
    %vm185 = vcmask 523264
    %v186 = vsel %vm185, %v183, 0.0
    %187 = vadd.xlane.f32.xlu0 %v186
    %v188 = vpop.xlane.xlu0 %187
    %v189 = vsel %vm185, %v184, 0.0
    %190 = vadd.xlane.f32.xlu0 %v189
    %v191 = vpop.xlane.xlu0 %190
    %v192 = vmul.f32 %v183, %v183
    %v193 = vmul.f32 %v184, %v184
    %v194 = vsel %vm185, %v192, 0.0
    %195 = vadd.xlane.f32.xlu0 %v194
    %v196 = vpop.xlane.xlu0 %195
    %v197 = vsel %vm185, %v193, 0.0
    %198 = vadd.xlane.f32.xlu0 %v197
    %v199 = vpop.xlane.xlu0 %198
    %v200 = vmul.f32 %v188, 0.015625
    %v201 = vmul.f32 %v191, 0.015625
    %v202 = vmul.f32 %v196, 0.015625
    %v203 = vmul.f32 %v199, 0.015625
    %v204 = vmul.f32 %v200, %v200
    %v205 = vmul.f32 %v201, %v201
    %v206 = vsub.f32 %v202, %v204
    %v207 = vsub.f32 %v203, %v205
    %v208 = vmax.f32 %v206, 0.0
    %v209 = vmax.f32 %v207, 0.0
    %v210 = vsub.f32 %v183, %v200
    %v211 = vsub.f32 %v184, %v201
    %v212 = vadd.f32 %v208, 1e-06
    %v213 = vadd.f32 %v209, 1e-06
    %v214 = vrsqrt.pop %v212
    %v215 = vrsqrt.pop %v213
    %v216 = vmul.f32 %v210, %v214
    %v217 = vmul.f32 %v211, %v215
    %v218 = vld [vmem:[%s5] sm:$0x1]
    %v220 = vlaneseq
    %v221 = vshrl.u32 %v220, 7
    %v222 = vsub.s32 0, %v221
    %v223 = vrot.slane %v218, %v222
    %v225 = vmul.f32 %v216, %v223
    %v226 = vmul.f32 %v217, %v223
    %v227 = vld [vmem:[%s6] sm:$0x1]
    %v229 = vlaneseq
    %v230 = vshrl.u32 %v229, 7
    %v231 = vsub.s32 0, %v230
    %v232 = vrot.slane %v227, %v231
    %v234 = vadd.f32 %v225, %v232
    %v235 = vadd.f32 %v226, %v232
    %v236 = vpack.c.bf16 %v235, %v234
    %v237 = vld [vmem:[%s7] sm:$0xf]
    %v238 = vld [vmem:[%s7 + $0x4] sm:$0xf]
    %v239 = vld [vmem:[%s7 + $0x8] sm:$0xf]
    %v240 = vld [vmem:[%s7 + $0xc] sm:$0xf]
    %v241 = vld [vmem:[%s7 + $0x10] sm:$0xf]
    %v242 = vld [vmem:[%s7 + $0x14] sm:$0xf]
    %v243 = vld [vmem:[%s7 + $0x18] sm:$0xf]
    %v244 = vld [vmem:[%s7 + $0x1c] sm:$0xf]
    %v245 = vld [vmem:[%s8] sm:$0x1]
    %v247 = vlaneseq
    %v248 = vshrl.u32 %v247, 7
    %v249 = vsub.s32 0, %v248
    %v250 = vrot.slane %v245, %v249
    %v260 = vunpack.c.l.b16 %v237
    %v261 = vunpack.c.l.b16 %v238
    %v262 = vunpack.c.l.b16 %v239
    %v263 = vunpack.c.l.b16 %v240
    %v264 = vunpack.c.l.b16 %v241
    %v265 = vunpack.c.l.b16 %v242
    %v266 = vunpack.c.l.b16 %v243
    %v267 = vunpack.c.l.b16 %v244
    %v268 = vpack.c.b16 %v261, %v260
    %v269 = vpack.c.b16 %v263, %v262
    %v270 = vpack.c.b16 %v265, %v264
    %v271 = vpack.c.b16 %v267, %v266
    %v277 = vsel %vm185, %v236, 0
    %279 = vmatprep.subr.bf16.mxu0 0
    %280 = vmatpush1.bf16.msra.mxu0 0
    %281 = vmatprep.subr.bf16.mxu0 0
    %282 = vmatpush1.bf16.msra.mxu0 0
    %283 = vmatprep.subr.bf16.mxu0 0
    %284 = vmatpush1.bf16.msra.mxu0 0
    %285 = vmatprep.subr.bf16.mxu0 0
    %286 = vmatpush1.bf16.msra.mxu0 0
    %287 = vmatprep.subr.bf16.mxu0 0
    %288 = vmatpush1.bf16.msra.mxu0 %v271
    %289 = vmatprep.subr.bf16.mxu0 0
    %290 = vmatpush1.bf16.msra.mxu0 %v270
    %291 = vmatprep.subr.bf16.mxu0 0
    %292 = vmatpush1.bf16.msra.mxu0 %v269
    %293 = vmatprep.subr.bf16.mxu0 0
    %294 = vmatpush1.bf16.msra.mxu0 %v268
    %295 = vmatprep.subr.bf16.mxu0 0
    %296 = vmatpush2.bf16.msra.mxu0 0
    %297 = vmatprep.subr.bf16.mxu0 0
    %298 = vmatpush2.bf16.msra.mxu0 0
    %299 = vmatprep.subr.bf16.mxu0 0
    %300 = vmatpush2.bf16.msra.mxu0 0
    %301 = vmatprep.subr.bf16.mxu0 0
    %302 = vmatpush2.bf16.msra.mxu0 0
    %303 = vmatprep.subr.bf16.mxu0 0
    %304 = vmatpush2.bf16.msra.mxu0 0
    %305 = vmatprep.subr.bf16.mxu0 0
    %306 = vmatpush2.bf16.msra.mxu0 0
    %307 = vmatprep.subr.bf16.mxu0 0
    %308 = vmatpush2.bf16.msra.mxu0 0
    %309 = vmatprep.subr.bf16.mxu0 0
    %310 = vmatpush2.bf16.msra.mxu0 0
    %311 = vmatprep.mubr.bf16.mxu0 0
    %312 = vmatmul.mubr.bf16.gmra.mxu0 %v277
    %v313 = vpop.f32.mrf.mxu0
    %v314 = vadd.f32 %v250, %v313
    %v315 = vpop.f32.mrf.mxu0
    %v316 = vpop.f32.mrf.mxu0
    %v317 = vadd.f32 %v250, %v316
    %v318 = vpop.f32.mrf.mxu0
    %319 = vdwg.mxu0
    %320 = vst.msk [vmem:[#allocation2] sm:$0xff] %vm60, %v314
    %321 = vst.msk [vmem:[#allocation2 + $0x8] sm:$0xff] %vm60, %v317
    // Predicated region
    $region38: #{tpu_custom_call.1} parent=1 // pred_check
      _
    $region39: #{tpu_custom_call.1} parent=1 // pred_check_branch
      %323 = sbr.rel (0) target = $region41
    $region40: #{tpu_custom_call.1} parent=1 // pred_region
      %s325 = ssub.s32 256, 256
      %326 = vsyncadd [#allocation3], %s325
      %s327 = sshll.u32 [#allocation2], 4
      %s328 = int_to_ptr.vmem [resolvable:$true] %s327
      %333 = dma.vmem_to_hbm [thread:$0]  %s328, 256, %s9, [#allocation3], 128, 128, 8
    $region41: #{tpu_custom_call.1} parent=1 // pred_fallthru
      _
    // Predicated region
    $region42: #{tpu_custom_call.1} parent=1 // pred_check
      _
    $region43: #{tpu_custom_call.1} parent=1 // pred_check_branch
      %335 = sbr.rel (0) target = $region45
    $region44: #{tpu_custom_call.1} parent=1 // pred_region
      %336 = dma.done [#allocation3], 256
    $region45: #{tpu_custom_call.1} parent=1 // pred_fallthru
      _
    %337 = vsyncpa [#allocation3], 1

// kernel: tpu_custom_call.1
$region0: #{tpu_custom_call.1}
  #allocation0 [shape = 'u32[]', space=smem, size = 0x4, offset = 0x4, fixed_abs, tag = 'smem constant byte address 0x4 - core index']
  #allocation1 [shape = 'u32[144,128]{1,0:T(1,128)}', space=vmem, size = 0x12000, scoped, tag = 'internal scratch']
  %s0 = inlined_call_operand.vmem [shape: f32[16,32], index: 0, kind: input, shape index: {}]
  %s1 = inlined_call_operand.vmem [shape: bf16[32,64], index: 1, kind: input, shape index: {}]
  %s2 = inlined_call_operand.vmem [shape: f32[1,64], index: 2, kind: input, shape index: {}]
  %s3 = inlined_call_operand.vmem [shape: bf16[32,64], index: 3, kind: input, shape index: {}]
  %s4 = inlined_call_operand.vmem [shape: f32[1,64], index: 4, kind: input, shape index: {}]
  %s5 = inlined_call_operand.vmem [shape: f32[1,64], index: 5, kind: input, shape index: {}]
  %s6 = inlined_call_operand.vmem [shape: f32[1,64], index: 6, kind: input, shape index: {}]
  %s7 = inlined_call_operand.vmem [shape: bf16[64,32], index: 7, kind: input, shape index: {}]
  %s8 = inlined_call_operand.vmem [shape: f32[1,32], index: 8, kind: input, shape index: {}]
  %s9 = inlined_call_operand.hbm [shape: f32[16,32], index: 9, kind: output, shape index: {}]
  %s10 = sld [smem:[#allocation0]]
  $region46: #{tpu_custom_call.1} parent=0
    _
  %s12 = ssub.s32 1, %s10
  %s13 = scalar_select 0, %s12, %s10
  $region1: #{tpu_custom_call.1} parent=0
    #allocation2 [shape = 'u8[8192]{0}', space=vmem, size = 0x2000, scoped, tag = 'output window, operand 0, single buffered']
    #allocation3 [shape = 's32[1]{0}', space=sflag, size = 0x4, scoped, tag = 'scoped memory for tpu_custom_call.1']
    %14 = vsyncpa [#allocation3], 0
    // Predicated region
    $region2: #{tpu_custom_call.1} parent=1 // pred_check
      _
    $region3: #{tpu_custom_call.1} parent=1 // pred_check_branch
      %16 = sbr.rel (0) target = $region5
    $region4: #{tpu_custom_call.1} parent=1 // pred_region
      _
    $region5: #{tpu_custom_call.1} parent=1 // pred_fallthru
      _
    // Predicated region
    $region6: #{tpu_custom_call.1} parent=1 // pred_check
      _
    $region7: #{tpu_custom_call.1} parent=1 // pred_check_branch
      %18 = sbr.rel (0) target = $region9
    $region8: #{tpu_custom_call.1} parent=1 // pred_region
      _
    $region9: #{tpu_custom_call.1} parent=1 // pred_fallthru
      _
    // Predicated region
    $region10: #{tpu_custom_call.1} parent=1 // pred_check
      _
    $region11: #{tpu_custom_call.1} parent=1 // pred_check_branch
      %20 = sbr.rel (0) target = $region13
    $region12: #{tpu_custom_call.1} parent=1 // pred_region
      _
    $region13: #{tpu_custom_call.1} parent=1 // pred_fallthru
      _
    // Predicated region
    $region14: #{tpu_custom_call.1} parent=1 // pred_check
      _
    $region15: #{tpu_custom_call.1} parent=1 // pred_check_branch
      %22 = sbr.rel (0) target = $region17
    $region16: #{tpu_custom_call.1} parent=1 // pred_region
      _
    $region17: #{tpu_custom_call.1} parent=1 // pred_fallthru
      _
    // Predicated region
    $region18: #{tpu_custom_call.1} parent=1 // pred_check
      _
    $region19: #{tpu_custom_call.1} parent=1 // pred_check_branch
      %24 = sbr.rel (0) target = $region21
    $region20: #{tpu_custom_call.1} parent=1 // pred_region
      _
    $region21: #{tpu_custom_call.1} parent=1 // pred_fallthru
      _
    // Predicated region
    $region22: #{tpu_custom_call.1} parent=1 // pred_check
      _
    $region23: #{tpu_custom_call.1} parent=1 // pred_check_branch
      %26 = sbr.rel (0) target = $region25
    $region24: #{tpu_custom_call.1} parent=1 // pred_region
      _
    $region25: #{tpu_custom_call.1} parent=1 // pred_fallthru
      _
    // Predicated region
    $region26: #{tpu_custom_call.1} parent=1 // pred_check
      _
    $region27: #{tpu_custom_call.1} parent=1 // pred_check_branch
      %28 = sbr.rel (0) target = $region29
    $region28: #{tpu_custom_call.1} parent=1 // pred_region
      _
    $region29: #{tpu_custom_call.1} parent=1 // pred_fallthru
      _
    // Predicated region
    $region30: #{tpu_custom_call.1} parent=1 // pred_check
      _
    $region31: #{tpu_custom_call.1} parent=1 // pred_check_branch
      %30 = sbr.rel (0) target = $region33
    $region32: #{tpu_custom_call.1} parent=1 // pred_region
      _
    $region33: #{tpu_custom_call.1} parent=1 // pred_fallthru
      _
    // Predicated region
    $region34: #{tpu_custom_call.1} parent=1 // pred_check
      _
    $region35: #{tpu_custom_call.1} parent=1 // pred_check_branch
      %32 = sbr.rel (0) target = $region37
    $region36: #{tpu_custom_call.1} parent=1 // pred_region
      _
    $region37: #{tpu_custom_call.1} parent=1 // pred_fallthru
      _
    %v34 = vld [vmem:[%s0] sm:$0xff]
    %v35 = vld [vmem:[%s0 + $0x8] sm:$0xff]
    %v36 = vpack.c.bf16 %v35, %v34
    %v37 = vld [vmem:[%s1] sm:$0xf]
    %v38 = vld [vmem:[%s1 + $0x4] sm:$0xf]
    %v39 = vld [vmem:[%s1 + $0x8] sm:$0xf]
    %v40 = vld [vmem:[%s1 + $0xc] sm:$0xf]
    %v41 = vld [vmem:[%s2] sm:$0x1]
    %v43 = vlaneseq
    %v44 = vshrl.u32 %v43, 7
    %v45 = vsub.s32 0, %v44
    %v46 = vrot.slane %v41, %v45
    %v52 = vunpack.c.l.b16 %v37
    %v53 = vunpack.c.l.b16 %v38
    %v54 = vunpack.c.l.b16 %v39
    %v55 = vunpack.c.l.b16 %v40
    %v56 = vpack.c.b16 %v53, %v52
    %v57 = vpack.c.b16 %v55, %v54
    %vm60 = vcmask 261120
    %v62 = vsel %vm60, %v36, 0
    %64 = vmatprep.subr.bf16.mxu0 0
    %65 = vmatpush1.bf16.msra.mxu0 0
    %66 = vmatprep.subr.bf16.mxu0 0
    %67 = vmatpush1.bf16.msra.mxu0 0
    %68 = vmatprep.subr.bf16.mxu0 0
    %69 = vmatpush1.bf16.msra.mxu0 0
    %70 = vmatprep.subr.bf16.mxu0 0
    %71 = vmatpush1.bf16.msra.mxu0 0
    %72 = vmatprep.subr.bf16.mxu0 0
    %73 = vmatpush1.bf16.msra.mxu0 0
    %74 = vmatprep.subr.bf16.mxu0 0
    %75 = vmatpush1.bf16.msra.mxu0 0
    %76 = vmatprep.subr.bf16.mxu0 0
    %77 = vmatpush1.bf16.msra.mxu0 %v57
    %78 = vmatprep.subr.bf16.mxu0 0
    %79 = vmatpush1.bf16.msra.mxu0 %v56
    %80 = vmatprep.subr.bf16.mxu0 0
    %81 = vmatpush2.bf16.msra.mxu0 0
    %82 = vmatprep.subr.bf16.mxu0 0
    %83 = vmatpush2.bf16.msra.mxu0 0
    %84 = vmatprep.subr.bf16.mxu0 0
    %85 = vmatpush2.bf16.msra.mxu0 0
    %86 = vmatprep.subr.bf16.mxu0 0
    %87 = vmatpush2.bf16.msra.mxu0 0
    %88 = vmatprep.subr.bf16.mxu0 0
    %89 = vmatpush2.bf16.msra.mxu0 0
    %90 = vmatprep.subr.bf16.mxu0 0
    %91 = vmatpush2.bf16.msra.mxu0 0
    %92 = vmatprep.subr.bf16.mxu0 0
    %93 = vmatpush2.bf16.msra.mxu0 0
    %94 = vmatprep.subr.bf16.mxu0 0
    %95 = vmatpush2.bf16.msra.mxu0 0
    %96 = vmatprep.mubr.bf16.mxu0 0
    %97 = vmatmul.mubr.bf16.gmra.mxu0 %v62
    %v98 = vpop.f32.mrf.mxu0
    %v99 = vadd.f32 %v46, %v98
    %v100 = vpop.f32.mrf.mxu0
    %v101 = vpop.f32.mrf.mxu0
    %v102 = vadd.f32 %v46, %v101
    %v103 = vpop.f32.mrf.mxu0
    %104 = vdwg.mxu0
    %v105 = vld [vmem:[%s3] sm:$0xf]
    %v106 = vld [vmem:[%s3 + $0x4] sm:$0xf]
    %v107 = vld [vmem:[%s3 + $0x8] sm:$0xf]
    %v108 = vld [vmem:[%s3 + $0xc] sm:$0xf]
    %v109 = vld [vmem:[%s4] sm:$0x1]
    %v111 = vlaneseq
    %v112 = vshrl.u32 %v111, 7
    %v113 = vsub.s32 0, %v112
    %v114 = vrot.slane %v109, %v113
    %v120 = vunpack.c.l.b16 %v105
    %v121 = vunpack.c.l.b16 %v106
    %v122 = vunpack.c.l.b16 %v107
    %v123 = vunpack.c.l.b16 %v108
    %v124 = vpack.c.b16 %v121, %v120
    %v125 = vpack.c.b16 %v123, %v122
    %128 = vmatprep.subr.bf16.mxu0 0
    %129 = vmatpush1.bf16.msra.mxu0 0
    %130 = vmatprep.subr.bf16.mxu0 0
    %131 = vmatpush1.bf16.msra.mxu0 0
    %132 = vmatprep.subr.bf16.mxu0 0
    %133 = vmatpush1.bf16.msra.mxu0 0
    %134 = vmatprep.subr.bf16.mxu0 0
    %135 = vmatpush1.bf16.msra.mxu0 0
    %136 = vmatprep.subr.bf16.mxu0 0
    %137 = vmatpush1.bf16.msra.mxu0 0
    %138 = vmatprep.subr.bf16.mxu0 0
    %139 = vmatpush1.bf16.msra.mxu0 0
    %140 = vmatprep.subr.bf16.mxu0 0
    %141 = vmatpush1.bf16.msra.mxu0 %v125
    %142 = vmatprep.subr.bf16.mxu0 0
    %143 = vmatpush1.bf16.msra.mxu0 %v124
    %144 = vmatprep.subr.bf16.mxu0 0
    %145 = vmatpush2.bf16.msra.mxu0 0
    %146 = vmatprep.subr.bf16.mxu0 0
    %147 = vmatpush2.bf16.msra.mxu0 0
    %148 = vmatprep.subr.bf16.mxu0 0
    %149 = vmatpush2.bf16.msra.mxu0 0
    %150 = vmatprep.subr.bf16.mxu0 0
    %151 = vmatpush2.bf16.msra.mxu0 0
    %152 = vmatprep.subr.bf16.mxu0 0
    %153 = vmatpush2.bf16.msra.mxu0 0
    %154 = vmatprep.subr.bf16.mxu0 0
    %155 = vmatpush2.bf16.msra.mxu0 0
    %156 = vmatprep.subr.bf16.mxu0 0
    %157 = vmatpush2.bf16.msra.mxu0 0
    %158 = vmatprep.subr.bf16.mxu0 0
    %159 = vmatpush2.bf16.msra.mxu0 0
    %160 = vmatprep.mubr.bf16.mxu0 0
    %161 = vmatmul.mubr.bf16.gmra.mxu0 %v62
    %v162 = vpop.f32.mrf.mxu0
    %v163 = vadd.f32 %v114, %v162
    %v164 = vpop.f32.mrf.mxu0
    %v165 = vpop.f32.mrf.mxu0
    %v166 = vadd.f32 %v114, %v165
    %v167 = vpop.f32.mrf.mxu0
    %168 = vdwg.mxu0
    %v169 = vxor.u32 %v99, 2147483648
    %v170 = vxor.u32 %v102, 2147483648
    %v171 = vmul.f32 %v169, 1.442695
    %v172 = vpow.pop %v171
    %v173 = vmul.f32 %v170, 1.442695
    %v174 = vpow.pop %v173
    %v175 = vadd.f32 %v172, 1.0
    %v176 = vadd.f32 %v174, 1.0
    %v177 = vrcp.pop %v175
    %v178 = vmul.f32 1.0, %v177
    %v179 = vrcp.pop %v176
    %v180 = vmul.f32 1.0, %v179
    %v181 = vmul.f32 %v99, %v178
    %v182 = vmul.f32 %v102, %v180
    %v183 = vmul.f32 %v181, %v163
    %v184 = vmul.f32 %v182, %v166
    %vm185 = vcmask 523264
    %v186 = vsel %vm185, %v183, 0.0
    %187 = vadd.xlane.f32.xlu0 %v186
    %v188 = vpop.xlane.xlu0 %187
    %v189 = vsel %vm185, %v184, 0.0
    %190 = vadd.xlane.f32.xlu0 %v189
    %v191 = vpop.xlane.xlu0 %190
    %v192 = vmul.f32 %v183, %v183
    %v193 = vmul.f32 %v184, %v184
    %v194 = vsel %vm185, %v192, 0.0
    %195 = vadd.xlane.f32.xlu0 %v194
    %v196 = vpop.xlane.xlu0 %195
    %v197 = vsel %vm185, %v193, 0.0
    %198 = vadd.xlane.f32.xlu0 %v197
    %v199 = vpop.xlane.xlu0 %198
    %v200 = vmul.f32 %v188, 0.015625
    %v201 = vmul.f32 %v191, 0.015625
    %v202 = vmul.f32 %v196, 0.015625
    %v203 = vmul.f32 %v199, 0.015625
    %v204 = vmul.f32 %v200, %v200
    %v205 = vmul.f32 %v201, %v201
    %v206 = vsub.f32 %v202, %v204
    %v207 = vsub.f32 %v203, %v205
    %v208 = vmax.f32 %v206, 0.0
    %v209 = vmax.f32 %v207, 0.0
    %v210 = vsub.f32 %v183, %v200
    %v211 = vsub.f32 %v184, %v201
    %v212 = vadd.f32 %v208, 1e-06
    %v213 = vadd.f32 %v209, 1e-06
    %v214 = vrsqrt.pop %v212
    %v215 = vrsqrt.pop %v213
    %v216 = vmul.f32 %v210, %v214
    %v217 = vmul.f32 %v211, %v215
    %v218 = vld [vmem:[%s5] sm:$0x1]
    %v220 = vlaneseq
    %v221 = vshrl.u32 %v220, 7
    %v222 = vsub.s32 0, %v221
    %v223 = vrot.slane %v218, %v222
    %v225 = vmul.f32 %v216, %v223
    %v226 = vmul.f32 %v217, %v223
    %v227 = vld [vmem:[%s6] sm:$0x1]
    %v229 = vlaneseq
    %v230 = vshrl.u32 %v229, 7
    %v231 = vsub.s32 0, %v230
    %v232 = vrot.slane %v227, %v231
    %v234 = vadd.f32 %v225, %v232
    %v235 = vadd.f32 %v226, %v232
    %v236 = vpack.c.bf16 %v235, %v234
    %v237 = vld [vmem:[%s7] sm:$0xf]
    %v238 = vld [vmem:[%s7 + $0x4] sm:$0xf]
    %v239 = vld [vmem:[%s7 + $0x8] sm:$0xf]
    %v240 = vld [vmem:[%s7 + $0xc] sm:$0xf]
    %v241 = vld [vmem:[%s7 + $0x10] sm:$0xf]
    %v242 = vld [vmem:[%s7 + $0x14] sm:$0xf]
    %v243 = vld [vmem:[%s7 + $0x18] sm:$0xf]
    %v244 = vld [vmem:[%s7 + $0x1c] sm:$0xf]
    %v245 = vld [vmem:[%s8] sm:$0x1]
    %v247 = vlaneseq
    %v248 = vshrl.u32 %v247, 7
    %v249 = vsub.s32 0, %v248
    %v250 = vrot.slane %v245, %v249
    %v260 = vunpack.c.l.b16 %v237
    %v261 = vunpack.c.l.b16 %v238
    %v262 = vunpack.c.l.b16 %v239
    %v263 = vunpack.c.l.b16 %v240
    %v264 = vunpack.c.l.b16 %v241
    %v265 = vunpack.c.l.b16 %v242
    %v266 = vunpack.c.l.b16 %v243
    %v267 = vunpack.c.l.b16 %v244
    %v268 = vpack.c.b16 %v261, %v260
    %v269 = vpack.c.b16 %v263, %v262
    %v270 = vpack.c.b16 %v265, %v264
    %v271 = vpack.c.b16 %v267, %v266
    %v277 = vsel %vm185, %v236, 0
    %279 = vmatprep.subr.bf16.mxu0 0
    %280 = vmatpush1.bf16.msra.mxu0 0
    %281 = vmatprep.subr.bf16.mxu0 0
    %282 = vmatpush1.bf16.msra.mxu0 0
    %283 = vmatprep.subr.bf16.mxu0 0
    %284 = vmatpush1.bf16.msra.mxu0 0
    %285 = vmatprep.subr.bf16.mxu0 0
    %286 = vmatpush1.bf16.msra.mxu0 0
    %287 = vmatprep.subr.bf16.mxu0 0
    %288 = vmatpush1.bf16.msra.mxu0 %v271
    %289 = vmatprep.subr.bf16.mxu0 0
    %290 = vmatpush1.bf16.msra.mxu0 %v270
    %291 = vmatprep.subr.bf16.mxu0 0
    %292 = vmatpush1.bf16.msra.mxu0 %v269
    %293 = vmatprep.subr.bf16.mxu0 0
    %294 = vmatpush1.bf16.msra.mxu0 %v268
    %295 = vmatprep.subr.bf16.mxu0 0
    %296 = vmatpush2.bf16.msra.mxu0 0
    %297 = vmatprep.subr.bf16.mxu0 0
    %298 = vmatpush2.bf16.msra.mxu0 0
    %299 = vmatprep.subr.bf16.mxu0 0
    %300 = vmatpush2.bf16.msra.mxu0 0
    %301 = vmatprep.subr.bf16.mxu0 0
    %302 = vmatpush2.bf16.msra.mxu0 0
    %303 = vmatprep.subr.bf16.mxu0 0
    %304 = vmatpush2.bf16.msra.mxu0 0
    %305 = vmatprep.subr.bf16.mxu0 0
    %306 = vmatpush2.bf16.msra.mxu0 0
    %307 = vmatprep.subr.bf16.mxu0 0
    %308 = vmatpush2.bf16.msra.mxu0 0
    %309 = vmatprep.subr.bf16.mxu0 0
    %310 = vmatpush2.bf16.msra.mxu0 0
    %311 = vmatprep.mubr.bf16.mxu0 0
    %312 = vmatmul.mubr.bf16.gmra.mxu0 %v277
    %v313 = vpop.f32.mrf.mxu0
    %v314 = vadd.f32 %v250, %v313
    %v315 = vpop.f32.mrf.mxu0
    %v316 = vpop.f32.mrf.mxu0
    %v317 = vadd.f32 %v250, %v316
    %v318 = vpop.f32.mrf.mxu0
    %319 = vdwg.mxu0
    %320 = vst.msk [vmem:[#allocation2] sm:$0xff] %vm60, %v314
    %321 = vst.msk [vmem:[#allocation2 + $0x8] sm:$0xff] %vm60, %v317
    // Predicated region
    $region38: #{tpu_custom_call.1} parent=1 // pred_check
      _
    $region39: #{tpu_custom_call.1} parent=1 // pred_check_branch
      %323 = sbr.rel (0) target = $region41
    $region40: #{tpu_custom_call.1} parent=1 // pred_region
      %s325 = ssub.s32 256, 256
      %326 = vsyncadd [#allocation3], %s325
      %s327 = sshll.u32 [#allocation2], 4
      %s328 = int_to_ptr.vmem [resolvable:$true] %s327
      %333 = dma.vmem_to_hbm [thread:$0]  %s328, 256, %s9, [#allocation3], 128, 128, 8
    $region41: #{tpu_custom_call.1} parent=1 // pred_fallthru
      _
    // Predicated region
    $region42: #{tpu_custom_call.1} parent=1 // pred_check
      _
    $region43: #{tpu_custom_call.1} parent=1 // pred_check_branch
      %335 = sbr.rel (0) target = $region45
    $region44: #{tpu_custom_call.1} parent=1 // pred_region
      %336 = dma.done [#allocation3], 256
    $region45: #{tpu_custom_call.1} parent=1 // pred_fallthru
      _
    %337 = vsyncpa [#allocation3], 1

</llo_original>
